<compile_context>
chip_gen: v7x
topology: tpu7x:2x2x1
jax: 0.10.0
libtpu: 0.0.40
codegen_flags: <defaults>
</compile_context>

<pallas_src>
import math

import jax
import jax.numpy as jnp
from jax.experimental import pallas as pl
from jax.experimental.pallas import tpu as pltpu


_ACC_CAP_BYTES = 2 * 1024 * 1024       # cap on the f32 accumulator tile
_D_TILE_MAX = 16384                    # max lane-tile in elements
_SMALL_INPUT_BYTES = 1 * 1024 * 1024   # below this, a plain XLA reduce wins


def _sublane_quantum(dtype):
    # 8 for 4-byte, 16 for 2-byte, 32 for 1-byte dtypes.
    return max(8, 32 // jnp.dtype(dtype).itemsize)


def _tpu_generation_params():
    """Generation-aware tiling / VMEM-budget parameters."""
    vmem_bytes = None
    try:
        info = pltpu.get_tpu_info()
        vmem_bytes = getattr(info, "vmem_capacity_bytes", None)
    except Exception:
        vmem_bytes = None
    if vmem_bytes is None:
        vmem_bytes = 64 * 1024 * 1024  # conservative (v7x-sized) fallback

    if vmem_bytes >= 100 * 1024 * 1024:
        # v5e / v6e: 128 MiB VMEM, single TensorCore -> big tiles, serial grid.
        return dict(target_tile_bytes=12 << 20, vmem_limit_bytes=64 << 20, num_tc=1)
    # v7x-like: 64 MiB VMEM per TC, 2 TensorCores -> smaller buffers,
    # keep the grid balanced across cores.
    return dict(target_tile_bytes=6 << 20, vmem_limit_bytes=48 << 20, num_tc=2)


def _choose_tiles(nvids, clip_length, d, dtype, *, target_tile_bytes, num_tc):
    """Pick (bv, td): videos per block and lane (feature) tile."""
    itemsize = jnp.dtype(dtype).itemsize
    sub = _sublane_quantum(dtype)

    # Lane tile: full feature extent when it fits; else a multiple of 128 so
    # loads/stores stay lane-dense.
    td = d if d <= _D_TILE_MAX else (_D_TILE_MAX // 128) * 128

    def videos_for_budget(td_):
        per_video = max(1, clip_length * td_ * itemsize)
        n = target_tile_bytes // per_video
        n = min(n, _ACC_CAP_BYTES // max(1, td_ * 4))  # bound the f32 acc tile
        return int(max(0, n))

    bv = videos_for_budget(td)
    if bv < sub and td > 128 and nvids > sub:
        # A sublane-aligned video block does not fit the budget at this lane
        # tile; shrink the lane tile instead of emitting unaligned stores.
        td_fit = (target_tile_bytes // (sub * clip_length * itemsize)) // 128 * 128
        td = int(max(128, min(td, td_fit)))
        bv = videos_for_budget(td)
    bv = max(1, bv)

    if bv >= nvids:
        bv = nvids                          # full extent: always a legal block
    else:
        bv = max(sub, (bv // sub) * sub)    # sublane-aligned partial blocks
        bv = min(bv, nvids)

    # Megacore (v7x): make sure there are at least num_tc grid steps so no
    # TensorCore sits idle.  On single-TC chips the grid is a serial loop and
    # shrinking the tile would only add per-step overhead, so do nothing.
    if num_tc > 1:
        v_steps = pl.cdiv(nvids, bv)
        d_steps = pl.cdiv(d, td)
        if v_steps * d_steps < num_tc:
            split = (pl.cdiv(nvids, num_tc) // sub) * sub
            if split >= sub:
                bv = split

    return int(bv), int(td)


def _make_frame_mean_kernel(clip_length, bv):
    inv_clip = 1.0 / float(clip_length)

    if clip_length == 1:
        def kernel(x_ref, o_ref, acc_ref):
            del acc_ref
            o_ref[...] = x_ref[...].astype(o_ref.dtype)
        return kernel

    def kernel(x_ref, o_ref, acc_ref):
        # x_ref: (bv*clip_length, td) dense slab.  Frame t of video v sits at
        # row v*clip_length + t, i.e. a sublane-strided slice per frame.
        acc_ref[...] = x_ref[pl.ds(0, bv, stride=clip_length), :].astype(jnp.float32)
        for t in range(1, clip_length):
            acc_ref[...] += x_ref[pl.ds(t, bv, stride=clip_length), :].astype(jnp.float32)
        o_ref[...] = (acc_ref[...] * inv_clip).astype(o_ref.dtype)

    return kernel


def aggregate_forward(x, clip_length, *, force_pallas=None, max_videos_per_block=None):
    """Mean-pool frames: x (nvids*clip_length, *feat) -> (nvids, *feat)."""
    total = x.shape[0]
    assert total % clip_length == 0, "leading dim must be divisible by clip_length"
    nvids = total // clip_length
    feat_shape = x.shape[1:]
    d = int(math.prod(feat_shape)) if feat_shape else 1
    itemsize = jnp.dtype(x.dtype).itemsize

    use_pallas = force_pallas
    if use_pallas is None:
        use_pallas = (total * d * itemsize) >= _SMALL_INPUT_BYTES
    if not use_pallas:
        # Tiny input: pallas_call launch + per-step overhead dominates; XLA's
        # fused reduce is strictly faster here.
        x3 = x.reshape((nvids, clip_length) + feat_shape)
        return jnp.mean(x3.astype(jnp.float32), axis=1).astype(x.dtype)

    gen = _tpu_generation_params()
    bv, td = _choose_tiles(
        nvids, clip_length, d, x.dtype,
        target_tile_bytes=gen["target_tile_bytes"], num_tc=gen["num_tc"])
    if max_videos_per_block is not None:
        bv = int(min(bv, max(1, max_videos_per_block)))

    # Block the ORIGINAL 2-D layout: rows of one video block are contiguous.
    x2 = x.reshape(nvids * clip_length, d)
    grid = (pl.cdiv(nvids, bv), pl.cdiv(d, td))

    cost = pl.CostEstimate(
        flops=nvids * clip_length * d,
        transcendentals=0,
        bytes_accessed=(nvids * clip_length * d + nvids * d) * itemsize,
    )

    out = pl.pallas_call(
        _make_frame_mean_kernel(clip_length, bv),
        out_shape=jax.ShapeDtypeStruct((nvids, d), x.dtype),
        grid_spec=pltpu.PrefetchScalarGridSpec(
            num_scalar_prefetch=0,
            grid=grid,
            in_specs=[
                pl.BlockSpec((bv * clip_length, td), lambda i, j: (i, j)),
            ],
            out_specs=pl.BlockSpec((bv, td), lambda i, j: (i, j)),
            scratch_shapes=[pltpu.VMEM((bv, td), jnp.float32)],
        ),
        compiler_params=pltpu.CompilerParams(
            dimension_semantics=("parallel", "parallel"),
            vmem_limit_bytes=gen["vmem_limit_bytes"],
        ),
        cost_estimate=cost,
    )(x2)

    return out.reshape((nvids,) + feat_shape)


if __name__ == "__main__":
    key = jax.random.PRNGKey(0)

    def ref_mean(x, clip):
        nv = x.shape[0] // clip
        return x.reshape((nv, clip) + x.shape[1:]).mean(axis=1)

    # Test 1: the module's typical small configuration.  Auto path (fast XLA
    # reduce for tiny inputs) and the Pallas path forced, both vs reference.
    clip1, nv1, feat1 = 8, 2, (4, 16)
    x1 = jax.random.normal(key, (nv1 * clip1,) + feat1, dtype=jnp.float32)
    ref1 = ref_mean(x1, clip1)
    out1 = jax.block_until_ready(aggregate_forward(x1, clip1))
    out1p = jax.block_until_ready(aggregate_forward(x1, clip1, force_pallas=True))
    assert out1.shape == (nv1,) + feat1
    assert jnp.allclose(out1, ref1, atol=1e-5, rtol=1e-5)
    assert jnp.allclose(out1p, ref1, atol=1e-5, rtol=1e-5)

    # Test 2: clip_length below the f32 sublane quantum + several videos per
    # block (exercises the strided clip reduction with stride 4).
    clip2, nv2, feat2 = 4, 16, (32, 8)
    x2 = jax.random.normal(jax.random.fold_in(key, 1),
                           (nv2 * clip2,) + feat2, dtype=jnp.float32)
    ref2 = ref_mean(x2, clip2)
    out2 = jax.block_until_ready(aggregate_forward(x2, clip2, force_pallas=True))
    assert out2.shape == (nv2,) + feat2
    assert jnp.allclose(out2, ref2, atol=1e-5, rtol=1e-5)

    # Test 3: multi-step grid with a partial trailing video block
    # (nvids=20, bv capped at the sublane quantum 8) and a flat feature dim.
    clip3, nv3, feat3 = 8, 20, (384,)
    x3 = jax.random.normal(jax.random.fold_in(key, 2),
                           (nv3 * clip3,) + feat3, dtype=jnp.float32)
    ref3 = ref_mean(x3, clip3)
    out3 = jax.block_until_ready(
        aggregate_forward(x3, clip3, force_pallas=True, max_videos_per_block=8))
    assert out3.shape == (nv3,) + feat3
    assert jnp.allclose(out3, ref3, atol=1e-5, rtol=1e-5)

    print("KERNEL_OK")
</pallas_src>

<mosaic_0001>
module attributes {stable_mosaic.version = 11 : i64} {
  func.func @kernel(%arg0: i32, %arg1: i32, %arg2: memref<16x64xf32, #tpu.memory_space<vmem>>, %arg3: memref<2x64xf32, #tpu.memory_space<vmem>>, %arg4: memref<2x64xf32, #tpu.memory_space<vmem>>) attributes {dimension_semantics = [#tpu.dimension_semantics<parallel>, #tpu.dimension_semantics<parallel>], iteration_bounds = array<i64: 1, 1>, scalar_prefetch = 0 : i64, scratch_operands = 1 : i64, tpu.core_type = #tpu.core_type<tc>, window_params = [{transform_indices = @transform_0, window_bounds = array<i64: 16, 64>}, {transform_indices = @transform_1, window_bounds = array<i64: 2, 64>}]} {
    %c0 = arith.constant 0 : index
    %c0_0 = arith.constant 0 : index
    %0 = tpu.strided_load %arg2[%c0, %c0_0] {strides = array<i32: 8, 1>} : memref<16x64xf32, #tpu.memory_space<vmem>>, vector<2x64xf32>
    %c0_1 = arith.constant 0 : index
    %c0_2 = arith.constant 0 : index
    %1 = vector.load %arg4[%c0_1, %c0_2] : memref<2x64xf32, #tpu.memory_space<vmem>>, vector<2x64xf32>
    tpu.vector_store %arg4[%c0_1, %c0_2], %0 {strides = array<i32>} : memref<2x64xf32, #tpu.memory_space<vmem>>, vector<2x64xf32>,
    %c0_3 = arith.constant 0 : index
    %c0_4 = arith.constant 0 : index
    %2 = vector.load %arg4[%c0_3, %c0_4] : memref<2x64xf32, #tpu.memory_space<vmem>>, vector<2x64xf32>
    %c1 = arith.constant 1 : index
    %c0_5 = arith.constant 0 : index
    %3 = tpu.strided_load %arg2[%c1, %c0_5] {strides = array<i32: 8, 1>} : memref<16x64xf32, #tpu.memory_space<vmem>>, vector<2x64xf32>
    %4 = arith.addf %2, %3 : vector<2x64xf32>
    %c0_6 = arith.constant 0 : index
    %c0_7 = arith.constant 0 : index
    %5 = vector.load %arg4[%c0_6, %c0_7] : memref<2x64xf32, #tpu.memory_space<vmem>>, vector<2x64xf32>
    tpu.vector_store %arg4[%c0_6, %c0_7], %4 {strides = array<i32>} : memref<2x64xf32, #tpu.memory_space<vmem>>, vector<2x64xf32>,
    %c0_8 = arith.constant 0 : index
    %c0_9 = arith.constant 0 : index
    %6 = vector.load %arg4[%c0_8, %c0_9] : memref<2x64xf32, #tpu.memory_space<vmem>>, vector<2x64xf32>
    %c2 = arith.constant 2 : index
    %c0_10 = arith.constant 0 : index
    %7 = tpu.strided_load %arg2[%c2, %c0_10] {strides = array<i32: 8, 1>} : memref<16x64xf32, #tpu.memory_space<vmem>>, vector<2x64xf32>
    %8 = arith.addf %6, %7 : vector<2x64xf32>
    %c0_11 = arith.constant 0 : index
    %c0_12 = arith.constant 0 : index
    %9 = vector.load %arg4[%c0_11, %c0_12] : memref<2x64xf32, #tpu.memory_space<vmem>>, vector<2x64xf32>
    tpu.vector_store %arg4[%c0_11, %c0_12], %8 {strides = array<i32>} : memref<2x64xf32, #tpu.memory_space<vmem>>, vector<2x64xf32>,
    %c0_13 = arith.constant 0 : index
    %c0_14 = arith.constant 0 : index
    %10 = vector.load %arg4[%c0_13, %c0_14] : memref<2x64xf32, #tpu.memory_space<vmem>>, vector<2x64xf32>
    %c3 = arith.constant 3 : index
    %c0_15 = arith.constant 0 : index
    %11 = tpu.strided_load %arg2[%c3, %c0_15] {strides = array<i32: 8, 1>} : memref<16x64xf32, #tpu.memory_space<vmem>>, vector<2x64xf32>
    %12 = arith.addf %10, %11 : vector<2x64xf32>
    %c0_16 = arith.constant 0 : index
    %c0_17 = arith.constant 0 : index
    %13 = vector.load %arg4[%c0_16, %c0_17] : memref<2x64xf32, #tpu.memory_space<vmem>>, vector<2x64xf32>
    tpu.vector_store %arg4[%c0_16, %c0_17], %12 {strides = array<i32>} : memref<2x64xf32, #tpu.memory_space<vmem>>, vector<2x64xf32>,
    %c0_18 = arith.constant 0 : index
    %c0_19 = arith.constant 0 : index
    %14 = vector.load %arg4[%c0_18, %c0_19] : memref<2x64xf32, #tpu.memory_space<vmem>>, vector<2x64xf32>
    %c4 = arith.constant 4 : index
    %c0_20 = arith.constant 0 : index
    %15 = tpu.strided_load %arg2[%c4, %c0_20] {strides = array<i32: 8, 1>} : memref<16x64xf32, #tpu.memory_space<vmem>>, vector<2x64xf32>
    %16 = arith.addf %14, %15 : vector<2x64xf32>
    %c0_21 = arith.constant 0 : index
    %c0_22 = arith.constant 0 : index
    %17 = vector.load %arg4[%c0_21, %c0_22] : memref<2x64xf32, #tpu.memory_space<vmem>>, vector<2x64xf32>
    tpu.vector_store %arg4[%c0_21, %c0_22], %16 {strides = array<i32>} : memref<2x64xf32, #tpu.memory_space<vmem>>, vector<2x64xf32>,
    %c0_23 = arith.constant 0 : index
    %c0_24 = arith.constant 0 : index
    %18 = vector.load %arg4[%c0_23, %c0_24] : memref<2x64xf32, #tpu.memory_space<vmem>>, vector<2x64xf32>
    %c5 = arith.constant 5 : index
    %c0_25 = arith.constant 0 : index
    %19 = tpu.strided_load %arg2[%c5, %c0_25] {strides = array<i32: 8, 1>} : memref<16x64xf32, #tpu.memory_space<vmem>>, vector<2x64xf32>
    %20 = arith.addf %18, %19 : vector<2x64xf32>
    %c0_26 = arith.constant 0 : index
    %c0_27 = arith.constant 0 : index
    %21 = vector.load %arg4[%c0_26, %c0_27] : memref<2x64xf32, #tpu.memory_space<vmem>>, vector<2x64xf32>
    tpu.vector_store %arg4[%c0_26, %c0_27], %20 {strides = array<i32>} : memref<2x64xf32, #tpu.memory_space<vmem>>, vector<2x64xf32>,
    %c0_28 = arith.constant 0 : index
    %c0_29 = arith.constant 0 : index
    %22 = vector.load %arg4[%c0_28, %c0_29] : memref<2x64xf32, #tpu.memory_space<vmem>>, vector<2x64xf32>
    %c6 = arith.constant 6 : index
    %c0_30 = arith.constant 0 : index
    %23 = tpu.strided_load %arg2[%c6, %c0_30] {strides = array<i32: 8, 1>} : memref<16x64xf32, #tpu.memory_space<vmem>>, vector<2x64xf32>
    %24 = arith.addf %22, %23 : vector<2x64xf32>
    %c0_31 = arith.constant 0 : index
    %c0_32 = arith.constant 0 : index
    %25 = vector.load %arg4[%c0_31, %c0_32] : memref<2x64xf32, #tpu.memory_space<vmem>>, vector<2x64xf32>
    tpu.vector_store %arg4[%c0_31, %c0_32], %24 {strides = array<i32>} : memref<2x64xf32, #tpu.memory_space<vmem>>, vector<2x64xf32>,
    %c0_33 = arith.constant 0 : index
    %c0_34 = arith.constant 0 : index
    %26 = vector.load %arg4[%c0_33, %c0_34] : memref<2x64xf32, #tpu.memory_space<vmem>>, vector<2x64xf32>
    %c7 = arith.constant 7 : index
    %c0_35 = arith.constant 0 : index
    %27 = tpu.strided_load %arg2[%c7, %c0_35] {strides = array<i32: 8, 1>} : memref<16x64xf32, #tpu.memory_space<vmem>>, vector<2x64xf32>
    %28 = arith.addf %26, %27 : vector<2x64xf32>
    %c0_36 = arith.constant 0 : index
    %c0_37 = arith.constant 0 : index
    %29 = vector.load %arg4[%c0_36, %c0_37] : memref<2x64xf32, #tpu.memory_space<vmem>>, vector<2x64xf32>
    tpu.vector_store %arg4[%c0_36, %c0_37], %28 {strides = array<i32>} : memref<2x64xf32, #tpu.memory_space<vmem>>, vector<2x64xf32>,
    %c0_38 = arith.constant 0 : index
    %c0_39 = arith.constant 0 : index
    %30 = vector.load %arg4[%c0_38, %c0_39] : memref<2x64xf32, #tpu.memory_space<vmem>>, vector<2x64xf32>
    %cst = arith.constant 1.250000e-01 : f32
    %31 = vector.broadcast %cst : f32 to vector<2x64xf32>
    %32 = arith.mulf %30, %31 : vector<2x64xf32>
    %c0_40 = arith.constant 0 : index
    %c0_41 = arith.constant 0 : index
    %33 = vector.load %arg3[%c0_40, %c0_41] : memref<2x64xf32, #tpu.memory_space<vmem>>, vector<2x64xf32>
    tpu.vector_store %arg3[%c0_40, %c0_41], %32 {strides = array<i32>} : memref<2x64xf32, #tpu.memory_space<vmem>>, vector<2x64xf32>,
    return
  }
  func.func @transform_0(%arg0: i32, %arg1: i32) -> (i32, i32) {
    %c0_i32 = arith.constant 0 : i32
    return %arg0, %arg1 : i32, i32
  }
  func.func @transform_1(%arg0: i32, %arg1: i32) -> (i32, i32) {
    %c0_i32 = arith.constant 0 : i32
    return %arg0, %arg1 : i32, i32
  }
}

</mosaic_0001>

<llo_original>
// kernel: tpu_custom_call.1
$region0: #{tpu_custom_call.1}
  #allocation0 [shape = 'u32[]', space=smem, size = 0x4, offset = 0x4, fixed_abs, tag = 'smem constant byte address 0x4 - core index']
  #allocation1 [shape = 'u32[144,128]{1,0:T(1,128)}', space=vmem, size = 0x12000, scoped, tag = 'internal scratch']
  #allocation2 [shape = 'f32[2,64]{1,0:T(2,128)}', space=vmem, size = 0x400, scoped, tag = 'scratch operand']
  %s0 = inlined_call_operand.hbm [shape: f32[16,64], index: 0, kind: input, shape index: {}]
  %s1 = inlined_call_operand.hbm [shape: f32[2,64], index: 1, kind: output, shape index: {}]
  %s2 = sld [smem:[#allocation0]]
  $region18: #{tpu_custom_call.1} parent=0
    _
  %s4 = ssub.s32 1, %s2
  %s5 = scalar_select 0, %s4, %s2
  $region1: #{tpu_custom_call.1} parent=0
    #allocation3 [shape = 'u8[8192]{0}', space=vmem, size = 0x2000, scoped, tag = 'input window, operand 0, single buffered']
    #allocation4 [shape = 's32[1]{0}', space=sflag, size = 0x4, scoped, tag = 'scoped memory for tpu_custom_call.1']
    #allocation5 [shape = 's32[1]{0}', space=sflag, size = 0x4, scoped, tag = 'scoped memory for tpu_custom_call.1']
    #allocation6 [shape = 'u8[1024]{0}', space=vmem, size = 0x400, scoped, tag = 'output window, operand 0, single buffered']
    %6 = vsyncpa [#allocation4], 0
    %7 = vsyncpa [#allocation5], 0
    // Predicated region
    $region2: #{tpu_custom_call.1} parent=1 // pred_check
      _
    $region3: #{tpu_custom_call.1} parent=1 // pred_check_branch
      %9 = sbr.rel (0) target = $region5
    $region4: #{tpu_custom_call.1} parent=1 // pred_region
      %s11 = ssub.s32 256, 256
      %12 = vsyncadd [#allocation4], %s11
      %s13 = sshll.u32 [#allocation3], 4
      %s14 = int_to_ptr.vmem [resolvable:$true] %s13
      %19 = dma.hbm_to_vmem [thread:$0]  %s0, 256, %s14, [#allocation4], 128, 128, 8
    $region5: #{tpu_custom_call.1} parent=1 // pred_fallthru
      _
    // Predicated region
    $region6: #{tpu_custom_call.1} parent=1 // pred_check
      _
    $region7: #{tpu_custom_call.1} parent=1 // pred_check_branch
      %21 = sbr.rel (0) target = $region9
    $region8: #{tpu_custom_call.1} parent=1 // pred_region
      %22 = dma.done [#allocation4], 256
    $region9: #{tpu_custom_call.1} parent=1 // pred_fallthru
      _
    %v23 = vld [vmem:[#allocation3] ss:$8 sm:$0x3]
    %vm24 = vcmask 517120
    %25 = vst.msk [vmem:[#allocation2] sm:$0x3] %vm24, %v23
    %v26 = vld [vmem:[#allocation2] sm:$0x3]
    %s27 = scalar_lea.vmem [#allocation3], 1
    %v28 = vld [vmem:[%s27] ss:$8 sm:$0x3]
    %v29 = vadd.f32 %v26, %v28
    %30 = vst.msk [vmem:[#allocation2] sm:$0x3] %vm24, %v29
    %v31 = vld [vmem:[#allocation2] sm:$0x3]
    %s32 = scalar_lea.vmem [#allocation3], 2
    %v33 = vld [vmem:[%s32] ss:$8 sm:$0x3]
    %v34 = vadd.f32 %v31, %v33
    %35 = vst.msk [vmem:[#allocation2] sm:$0x3] %vm24, %v34
    %v36 = vld [vmem:[#allocation2] sm:$0x3]
    %s37 = scalar_lea.vmem [#allocation3], 3
    %v38 = vld [vmem:[%s37] ss:$8 sm:$0x3]
    %v39 = vadd.f32 %v36, %v38
    %40 = vst.msk [vmem:[#allocation2] sm:$0x3] %vm24, %v39
    %v41 = vld [vmem:[#allocation2] sm:$0x3]
    %s42 = scalar_lea.vmem [#allocation3], 4
    %v43 = vld [vmem:[%s42] ss:$8 sm:$0x3]
    %v44 = vadd.f32 %v41, %v43
    %45 = vst.msk [vmem:[#allocation2] sm:$0x3] %vm24, %v44
    %v46 = vld [vmem:[#allocation2] sm:$0x3]
    %s47 = scalar_lea.vmem [#allocation3], 5
    %v48 = vld [vmem:[%s47] ss:$8 sm:$0x3]
    %v49 = vadd.f32 %v46, %v48
    %50 = vst.msk [vmem:[#allocation2] sm:$0x3] %vm24, %v49
    %v51 = vld [vmem:[#allocation2] sm:$0x3]
    %s52 = scalar_lea.vmem [#allocation3], 6
    %v53 = vld [vmem:[%s52] ss:$8 sm:$0x3]
    %v54 = vadd.f32 %v51, %v53
    %55 = vst.msk [vmem:[#allocation2] sm:$0x3] %vm24, %v54
    %v56 = vld [vmem:[#allocation2] sm:$0x3]
    %s57 = scalar_lea.vmem [#allocation3], 7
    %v58 = vld [vmem:[%s57] ss:$8 sm:$0x3]
    %v59 = vadd.f32 %v56, %v58
    %60 = vst.msk [vmem:[#allocation2] sm:$0x3] %vm24, %v59
    %v61 = vld [vmem:[#allocation2] sm:$0x3]
    %v62 = vmul.f32 %v61, 0.125
    %63 = vst.msk [vmem:[#allocation6] sm:$0x3] %vm24, %v62
    // Predicated region
    $region10: #{tpu_custom_call.1} parent=1 // pred_check
      _
    $region11: #{tpu_custom_call.1} parent=1 // pred_check_branch
      %65 = sbr.rel (0) target = $region13
    $region12: #{tpu_custom_call.1} parent=1 // pred_region
      %s67 = ssub.s32 32, 32
      %68 = vsyncadd [#allocation5], %s67
      %s70 = sshll.u32 [#allocation6], 4
      %s71 = int_to_ptr.vmem [resolvable:$true] %s70
      %73 = dma.vmem_to_hbm [thread:$0]  %s71, 32, %s1, [#allocation5]
    $region13: #{tpu_custom_call.1} parent=1 // pred_fallthru
      _
    // Predicated region
    $region14: #{tpu_custom_call.1} parent=1 // pred_check
      _
    $region15: #{tpu_custom_call.1} parent=1 // pred_check_branch
      %75 = sbr.rel (0) target = $region17
    $region16: #{tpu_custom_call.1} parent=1 // pred_region
      %76 = dma.done [#allocation5], 32
    $region17: #{tpu_custom_call.1} parent=1 // pred_fallthru
      _
    %77 = vsyncpa [#allocation4], 1
    %78 = vsyncpa [#allocation5], 1

</llo_original>
